<compile_context>
chip_gen: v5e
topology: v5e:2x2
jax: 0.10.0
libtpu: 0.0.40
codegen_flags: <defaults>
</compile_context>

<pallas_src>
import functools

import jax
import jax.numpy as jnp
from jax.experimental import pallas as pl
from jax.experimental.pallas import tpu as pltpu

EPS = 1e-5          # nn.InstanceNorm3d default eps
NEG_SLOPE = 0.01    # nn.LeakyReLU default negative_slope


def _round_up(x, m):
    return (x + m - 1) // m * m


def _conv_partial_stats_kernel(p_ref, w_ref, y_ref, psum_ref, psq_ref):
    """Pass 1: conv-as-matmul (lane-dense, transposed) + per-tile channel stats.

    p_ref:    (1, K, TS)     bf16  patch tile (K on sublanes, spatial on lanes)
    w_ref:    (Cp, K)        bf16  flattened conv weight
    y_ref:    (1, Cp, TS)    f32   un-normalized conv output tile
    psum_ref: (1, 1, Cp, 1)  f32   per-tile  sum_s y
    psq_ref:  (1, 1, Cp, 1)  f32   per-tile  sum_s y*y
    """
    y = jnp.dot(w_ref[...], p_ref[0], preferred_element_type=jnp.float32)  # (Cp, TS)
    y_ref[0] = y
    psum_ref[0, 0] = jnp.sum(y, axis=1, keepdims=True)        # (Cp, 1)
    psq_ref[0, 0] = jnp.sum(y * y, axis=1, keepdims=True)     # (Cp, 1)


def _norm_leaky_kernel(y_ref, sum_ref, sq_ref, o_ref, *, inv_s):
    """Pass 2: InstanceNorm over full S (biased variance, eps inside sqrt) + LeakyReLU.

    y_ref:   (1, Cp, TS)  f32  un-normalized conv output tile
    sum_ref: (1, Cp, 1)   f32  full-S per-channel sums
    sq_ref:  (1, Cp, 1)   f32  full-S per-channel sums of squares
    o_ref:   (1, Cp, TS)       normalized + activated output tile
    """
    mean = sum_ref[0] * inv_s                                   # (Cp, 1)
    var = jnp.maximum(sq_ref[0] * inv_s - mean * mean, 0.0)     # biased variance
    inv_std = jax.lax.rsqrt(var + EPS)                          # EUP, once per channel
    yn = (y_ref[0] - mean) * inv_std                            # lane-broadcast (Cp,TS)
    o_ref[0] = jnp.where(yn >= 0.0, yn, NEG_SLOPE * yn).astype(o_ref.dtype)


def downsampling_conv(x, weight, bias=None, *, ts=1024):
    """Conv3d(k=2, s=2) -> InstanceNorm3d(affine=False) -> LeakyReLU(0.01).

    x: (N, Cin, D, H, W) float32; weight: (Cout, Cin, 2, 2, 2); bias: (Cout,) or None.
    `bias` is accepted for API fidelity but cancels exactly under InstanceNorm.
    """
    N, Cin, D, H, W = x.shape
    Cout = weight.shape[0]
    assert D % 2 == 0 and H % 2 == 0 and W % 2 == 0
    D2, H2, W2 = D // 2, H // 2, W // 2
    S = D2 * H2 * W2
    K = Cin * 8
    Cp = _round_up(Cout, 8)                      # full sublane groups for the output
    TS = _round_up(min(ts, _round_up(S, 128)), 128)   # lane-dense spatial tile
    S_pad = _round_up(S, TS)
    nS = S_pad // TS
    out_dtype = x.dtype

    # ---- Patch extraction (wrapper-side), directly in the transposed lane-dense
    # layout (N, K, S): K = (cin, kd, kh, kw) on sublanes, S = (d2, h2, w2) on lanes.
    # Zero padding on S is safe: zero patches contribute 0 to sum/sumsq and we divide
    # by the true S; padded columns/channels are sliced off at the end.
    # TODO(synk): fold this gather into the Pallas kernel (DMA (Cin, 2*TD2, H, W) slabs
    # of x and rearrange in VMEM) to remove one extra HBM pass over the activations.
    xp = x.reshape(N, Cin, D2, 2, H2, 2, W2, 2)
    xp = jnp.transpose(xp, (0, 1, 3, 5, 7, 2, 4, 6))       # (N, Cin, 2,2,2, D2,H2,W2)
    patches_t = xp.reshape(N, K, S).astype(jnp.bfloat16)
    if S_pad != S:
        patches_t = jnp.pad(patches_t, ((0, 0), (0, 0), (0, S_pad - S)))

    w_mat = weight.reshape(Cout, K).astype(jnp.bfloat16)   # (Cout, K)
    if Cp != Cout:
        w_mat = jnp.pad(w_mat, ((0, Cp - Cout), (0, 0)))   # zero rows -> zero channels

    # ---- Pass 1: conv matmul + per-tile partial statistics.
    y_full, psum, psq = pl.pallas_call(
        _conv_partial_stats_kernel,
        out_shape=(
            jax.ShapeDtypeStruct((N, Cp, S_pad), jnp.float32),
            jax.ShapeDtypeStruct((N, nS, Cp, 1), jnp.float32),
            jax.ShapeDtypeStruct((N, nS, Cp, 1), jnp.float32),
        ),
        grid_spec=pltpu.PrefetchScalarGridSpec(
            num_scalar_prefetch=0,
            grid=(N, nS),
            in_specs=[
                pl.BlockSpec((1, K, TS), lambda n, s: (n, 0, s)),
                pl.BlockSpec((Cp, K), lambda n, s: (0, 0)),
            ],
            out_specs=[
                pl.BlockSpec((1, Cp, TS), lambda n, s: (n, 0, s)),
                pl.BlockSpec((1, 1, Cp, 1), lambda n, s: (n, s, 0, 0)),
                pl.BlockSpec((1, 1, Cp, 1), lambda n, s: (n, s, 0, 0)),
            ],
        ),
        compiler_params=pltpu.CompilerParams(
            dimension_semantics=("parallel", "parallel")),
        cost_estimate=pl.CostEstimate(
            flops=2 * N * S_pad * K * Cp,
            transcendentals=0,
            bytes_accessed=(N * K * S_pad * 2 + Cp * K * 2
                            + N * Cp * S_pad * 4 + 2 * N * nS * Cp * 4),
        ),
    )(patches_t, w_mat)

    # Combine the tiny per-tile partial stats into exact full-S statistics (f32).
    ch_sum = jnp.sum(psum, axis=1)      # (N, Cp, 1)
    ch_sq = jnp.sum(psq, axis=1)        # (N, Cp, 1)

    # ---- Pass 2: normalize + LeakyReLU (fully parallel over both grid axes).
    out = pl.pallas_call(
        functools.partial(_norm_leaky_kernel, inv_s=1.0 / S),
        out_shape=jax.ShapeDtypeStruct((N, Cp, S_pad), out_dtype),
        grid_spec=pltpu.PrefetchScalarGridSpec(
            num_scalar_prefetch=0,
            grid=(N, nS),
            in_specs=[
                pl.BlockSpec((1, Cp, TS), lambda n, s: (n, 0, s)),
                pl.BlockSpec((1, Cp, 1), lambda n, s: (n, 0, 0)),
                pl.BlockSpec((1, Cp, 1), lambda n, s: (n, 0, 0)),
            ],
            out_specs=pl.BlockSpec((1, Cp, TS), lambda n, s: (n, 0, s)),
        ),
        compiler_params=pltpu.CompilerParams(
            dimension_semantics=("parallel", "parallel")),
        cost_estimate=pl.CostEstimate(
            flops=5 * N * Cp * S_pad,
            transcendentals=N * nS * Cp,
            bytes_accessed=(N * Cp * S_pad * 4
                            + N * Cp * S_pad * jnp.dtype(out_dtype).itemsize),
        ),
    )(y_full, ch_sum, ch_sq)

    # (N, Cout, S) reshapes directly to NCDHW — no transpose needed.
    return out[:, :Cout, :S].reshape(N, Cout, D2, H2, W2)


def _reference_downsampling_conv(x, weight, bias):
    """Pure-JAX f32 reference matching the PyTorch module (includes the conv bias)."""
    N, Cin, D, H, W = x.shape
    Cout = weight.shape[0]
    D2, H2, W2 = D // 2, H // 2, W // 2
    xp = x.reshape(N, Cin, D2, 2, H2, 2, W2, 2)
    xp = jnp.transpose(xp, (0, 2, 4, 6, 1, 3, 5, 7)).reshape(N, D2 * H2 * W2, Cin * 8)
    y = jnp.einsum("nsk,ck->nsc", xp, weight.reshape(Cout, Cin * 8)) + bias[None, None, :]
    mean = jnp.mean(y, axis=1, keepdims=True)
    var = jnp.mean((y - mean) ** 2, axis=1, keepdims=True)
    yn = (y - mean) / jnp.sqrt(var + EPS)
    yn = jnp.where(yn >= 0, yn, NEG_SLOPE * yn)
    return jnp.transpose(yn.reshape(N, D2, H2, W2, Cout), (0, 4, 1, 2, 3))


if __name__ == "__main__":
    key = jax.random.PRNGKey(0)
    k1, k2, k3 = jax.random.split(key, 3)

    N, Cin, Cout = 2, 4, 8
    D = H = W = 16

    x = jax.random.normal(k1, (N, Cin, D, H, W), dtype=jnp.float32)
    fan_in = Cin * 2 * 2 * 2
    bound = 1.0 / (fan_in ** 0.5)
    weight = jax.random.uniform(k2, (Cout, Cin, 2, 2, 2), jnp.float32, -bound, bound)
    bias = jax.random.uniform(k3, (Cout,), jnp.float32, -bound, bound)

    # ts=128 => S=512 runs as 4 spatial tiles per batch element, exercising the
    # cross-tile InstanceNorm statistics path.  (Use ts=1024-2048 for real volumes.)
    y = downsampling_conv(x, weight, bias, ts=128)
    jax.block_until_ready(y)
    assert y.shape == (N, Cout, D // 2, H // 2, W // 2)

    ref = _reference_downsampling_conv(x, weight, bias)
    max_err = float(jnp.max(jnp.abs(y - ref)))
    assert max_err < 1e-1, f"max abs err vs f32 reference: {max_err}"
    print("KERNEL_OK")
</pallas_src>

<mosaic_0001>
module attributes {stable_mosaic.version = 11 : i64} {
  func.func @_conv_partial_stats_kernel(%arg0: i32, %arg1: i32, %arg2: memref<1x32x128xbf16, #tpu.memory_space<vmem>>, %arg3: memref<8x32xbf16, #tpu.memory_space<vmem>>, %arg4: memref<1x8x128xf32, #tpu.memory_space<vmem>>, %arg5: memref<1x1x8x1xf32, #tpu.memory_space<vmem>>, %arg6: memref<1x1x8x1xf32, #tpu.memory_space<vmem>>) attributes {dimension_semantics = [#tpu.dimension_semantics<parallel>, #tpu.dimension_semantics<parallel>], iteration_bounds = array<i64: 2, 4>, scalar_prefetch = 0 : i64, scratch_operands = 0 : i64, tpu.core_type = #tpu.core_type<tc>, window_params = [{transform_indices = @transform_0, window_bounds = array<i64: 1, 32, 128>}, {pipeline_mode = #tpu.pipeline_mode<synchronous>, transform_indices = @transform_1, window_bounds = array<i64: 8, 32>}, {transform_indices = @transform_2, window_bounds = array<i64: 1, 8, 128>}, {transform_indices = @transform_3, window_bounds = array<i64: 1, 1, 8, 1>}, {transform_indices = @transform_4, window_bounds = array<i64: 1, 1, 8, 1>}]} {
    %c0 = arith.constant 0 : index
    %c0_0 = arith.constant 0 : index
    %0 = vector.load %arg3[%c0, %c0_0] : memref<8x32xbf16, #tpu.memory_space<vmem>>, vector<8x32xbf16>
    %c0_1 = arith.constant 0 : index
    %c0_2 = arith.constant 0 : index
    %c0_3 = arith.constant 0 : index
    %1 = vector.load %arg2[%c0_1, %c0_2, %c0_3] : memref<1x32x128xbf16, #tpu.memory_space<vmem>>, vector<1x32x128xbf16>
    %2 = vector.shape_cast %1 : vector<1x32x128xbf16> to vector<32x128xbf16>
    %cst = arith.constant dense<0.000000e+00> : vector<8x128xf32>
    %3 = tpu.matmul %0, %2, %cst {dimension_numbers = #tpu.dot_dimension_numbers<[1], [0], [0], [1], [0, 0, 1, 1], [], []>} : vector<8x32xbf16>, vector<32x128xbf16>, vector<8x128xf32> -> vector<8x128xf32>
    %c0_4 = arith.constant 0 : index
    %c0_5 = arith.constant 0 : index
    %c0_6 = arith.constant 0 : index
    %4 = vector.load %arg4[%c0_4, %c0_5, %c0_6] : memref<1x8x128xf32, #tpu.memory_space<vmem>>, vector<1x8x128xf32>
    %5 = vector.shape_cast %4 : vector<1x8x128xf32> to vector<8x128xf32>
    %6 = vector.shape_cast %3 : vector<8x128xf32> to vector<1x8x128xf32>
    tpu.vector_store %arg4[%c0_4, %c0_5, %c0_6], %6 {strides = array<i32>} : memref<1x8x128xf32, #tpu.memory_space<vmem>>, vector<1x8x128xf32>,
    %cst_7 = arith.constant dense<0.000000e+00> : vector<8xf32>
    %7 = vector.multi_reduction <add>, %3, %cst_7 [1] : vector<8x128xf32> to vector<8xf32>
    %8 = vector.shape_cast %7 : vector<8xf32> to vector<8x1xf32>
    %c0_8 = arith.constant 0 : index
    %c0_9 = arith.constant 0 : index
    %c0_10 = arith.constant 0 : index
    %c0_11 = arith.constant 0 : index
    %9 = vector.load %arg5[%c0_8, %c0_9, %c0_10, %c0_11] : memref<1x1x8x1xf32, #tpu.memory_space<vmem>>, vector<1x1x8x1xf32>
    %10 = vector.shape_cast %9 : vector<1x1x8x1xf32> to vector<8x1xf32>
    %11 = vector.shape_cast %8 : vector<8x1xf32> to vector<1x1x8x1xf32>
    tpu.vector_store %arg5[%c0_8, %c0_9, %c0_10, %c0_11], %11 {strides = array<i32>} : memref<1x1x8x1xf32, #tpu.memory_space<vmem>>, vector<1x1x8x1xf32>,
    %12 = arith.mulf %3, %3 : vector<8x128xf32>
    %cst_12 = arith.constant dense<0.000000e+00> : vector<8xf32>
    %13 = vector.multi_reduction <add>, %12, %cst_12 [1] : vector<8x128xf32> to vector<8xf32>
    %14 = vector.shape_cast %13 : vector<8xf32> to vector<8x1xf32>
    %c0_13 = arith.constant 0 : index
    %c0_14 = arith.constant 0 : index
    %c0_15 = arith.constant 0 : index
    %c0_16 = arith.constant 0 : index
    %15 = vector.load %arg6[%c0_13, %c0_14, %c0_15, %c0_16] : memref<1x1x8x1xf32, #tpu.memory_space<vmem>>, vector<1x1x8x1xf32>
    %16 = vector.shape_cast %15 : vector<1x1x8x1xf32> to vector<8x1xf32>
    %17 = vector.shape_cast %14 : vector<8x1xf32> to vector<1x1x8x1xf32>
    tpu.vector_store %arg6[%c0_13, %c0_14, %c0_15, %c0_16], %17 {strides = array<i32>} : memref<1x1x8x1xf32, #tpu.memory_space<vmem>>, vector<1x1x8x1xf32>,
    return
  }
  func.func @transform_0(%arg0: i32, %arg1: i32) -> (i32, i32, i32) {
    %c0_i32 = arith.constant 0 : i32
    %c0_i32_0 = arith.constant 0 : i32
    return %arg0, %c0_i32, %arg1 : i32, i32, i32
  }
  func.func @transform_1(%arg0: i32, %arg1: i32) -> (i32, i32) {
    %c0_i32 = arith.constant 0 : i32
    %c0_i32_0 = arith.constant 0 : i32
    %c0_i32_1 = arith.constant 0 : i32
    return %c0_i32, %c0_i32_0 : i32, i32
  }
  func.func @transform_2(%arg0: i32, %arg1: i32) -> (i32, i32, i32) {
    %c0_i32 = arith.constant 0 : i32
    %c0_i32_0 = arith.constant 0 : i32
    return %arg0, %c0_i32, %arg1 : i32, i32, i32
  }
  func.func @transform_3(%arg0: i32, %arg1: i32) -> (i32, i32, i32, i32) {
    %c0_i32 = arith.constant 0 : i32
    %c0_i32_0 = arith.constant 0 : i32
    %c0_i32_1 = arith.constant 0 : i32
    return %arg0, %arg1, %c0_i32, %c0_i32_0 : i32, i32, i32, i32
  }
  func.func @transform_4(%arg0: i32, %arg1: i32) -> (i32, i32, i32, i32) {
    %c0_i32 = arith.constant 0 : i32
    %c0_i32_0 = arith.constant 0 : i32
    %c0_i32_1 = arith.constant 0 : i32
    return %arg0, %arg1, %c0_i32, %c0_i32_0 : i32, i32, i32, i32
  }
}

</mosaic_0001>

<llo_original>
// kernel: tpu_custom_call.1
$region0: #{tpu_custom_call.1}
  #allocation0 [shape = 'u32[]', space=smem, size = 0x4, offset = 0x4, fixed_abs, tag = 'smem constant byte address 0x4 - core index']
  #allocation1 [shape = 'u32[72,128]{1,0:T(1,128)}', space=vmem, size = 0x9000, scoped, tag = 'internal scratch']
  %s0 = inlined_call_operand.hbm [shape: bf16[2,32,512], index: 0, kind: input, shape index: {}]
  %s1 = inlined_call_operand.hbm [shape: bf16[8,32], index: 1, kind: input, shape index: {}]
  %s2 = inlined_call_operand.hbm [shape: f32[2,8,512], index: 2, kind: output, shape index: {0}]
  %s3 = inlined_call_operand.vmem [shape: f32[2,4,8,1], index: 3, kind: output, shape index: {1}]
  %s4 = inlined_call_operand.vmem [shape: f32[2,4,8,1], index: 4, kind: output, shape index: {2}]
  %5 = xla_tuple %s2, %s3, %s4
  %s6 = sld [smem:[#allocation0]]
  $region65: #{tpu_custom_call.1} parent=0
    _
  %s8 = ssub.s32 1, %s6
  %s9 = scalar_select 0, %s8, %s6
  $region1: #{tpu_custom_call.1} parent=0
    #allocation2 [shape = 'u8[16384]{0}', space=vmem, size = 0x4000, scoped, tag = 'input window, operand 0']
    #allocation3 [shape = 's32[2]{0}', space=sflag, size = 0x8, scoped, tag = 'scoped memory for tpu_custom_call.1']
    #allocation4 [shape = 's32[2]{0}', space=sflag, size = 0x8, scoped, tag = 'scoped memory for tpu_custom_call.1']
    #allocation5 [shape = 'u8[2048]{0}', space=vmem, size = 0x800, scoped, tag = 'input window, operand 1, single buffered']
    #allocation6 [shape = 's32[1]{0}', space=sflag, size = 0x4, scoped, tag = 'scoped memory for tpu_custom_call.1']
    #allocation7 [shape = 'u8[8192]{0}', space=vmem, size = 0x2000, scoped, tag = 'output window, operand 0']
    %10 = vsyncpa [#allocation3], 0
    %s11 = scalar_lea.sflag [#allocation3], 1
    %12 = vsyncpa %s11, 0
    %13 = vsyncpa [#allocation6], 0
    %14 = vsyncpa [#allocation4], 0
    %s15 = scalar_lea.sflag [#allocation4], 1
    %16 = vsyncpa %s15, 0
    loop: start=0, step=1, limit=10
    $region2: #{tpu_custom_call.1} parent=1 // loop_pre_header
      _
    $region3: #{tpu_custom_call.1} parent=1 // loop_header
      %s18 = sphi 0, %s22
      %p19 = scmp.ge.s32.totalorder %s18, 10
      %s25 = sphi 0, %s37
      %s26 = sphi 0, %s33
      %s27 = sphi 0, %s25
      %s28 = sphi 0, %s26
      %s29 = sphi 0, %s27
      %s30 = sphi 0, %s28
      %s42 = sphi 0, %s44
      %s45 = sphi 0, %s42
      %s46 = sphi 0, %s45
      %s62 = sphi 0, %s46
      %s66 = sphi 0, %s66
      %s68 = sphi 0, %s66
      %s69 = sphi 0, %s68
      %s83 = sphi 0, %s69
      %s91 = sphi 0, %s93
      %s94 = sphi 0, %s91
      %s95 = sphi 0, %s94
      %s111 = sphi 0, %s95
      %s119 = sphi 0, %s121
      %s122 = sphi 0, %s119
      %s123 = sphi 0, %s122
      %s139 = sphi 0, %s123
      %s147 = sphi 0, %s149
      %s150 = sphi 0, %s147
      %s151 = sphi 0, %s150
      %s167 = sphi 0, %s151
    $region4: #{tpu_custom_call.1} parent=1 // loop_header_branch
      %21 = sbr.rel (%p19) target = $region8
    $region5: #{tpu_custom_call.1} parent=1 // loop_body
      %s23 = ssub.s32 %s18, 1
      %s24 = ssub.s32 %s18, 2
      %s31 = sadd.s32 1, %s26
      %p32 = scmp.ge.s32.totalorder %s31, 4
      %s33 = scalar_select %p32, 0, %s31
      %s34 = sadd.s32 1, %s25
      %s35 = scalar_select %p32, %s34, %s25
      %p36 = scmp.ge.s32.totalorder %s35, 2
      %s37 = scalar_select %p36, 0, %s35
      %s38 = ssub.s32 %s25, %s37
      %s39 = ssub.s32 %s26, %s33
      %s40 = sor.u32 %s38, %s39
      %p41 = scmp.eq.s32.totalorder %s40, 0
      %s43 = sadd.s32 %s42, 1
      %s44 = scalar_select %p41, %s42, %s43
      %p47 = pneg %p41
      %p48 = scmp.eq.s32.totalorder %s18, 7
      %p49 = por %p47, %p48
      %p50 = scmp.ne.s32.totalorder %s42, %s45
      %p51 = scmp.eq.s32.totalorder %s18, 0
      %p52 = por %p50, %p51
      %p53 = scmp.ne.s32.totalorder %s42, %s45
      %p54 = scmp.eq.s32.totalorder %s23, 7
      %p55 = por %p53, %p54
      %p56 = scmp.ne.s32.totalorder %s45, %s46
      %p57 = scmp.eq.s32.totalorder %s23, 0
      %p58 = por %p56, %p57
      %p59 = scmp.ne.s32.totalorder %s45, %s46
      %p60 = scmp.eq.s32.totalorder %s24, 7
      %p61 = por %p59, %p60
      %p63 = scmp.ne.s32.totalorder %s46, %s62
      %p64 = scmp.eq.s32.totalorder %s24, 0
      %p65 = por %p63, %p64
      %s67 = sadd.s32 %s66, 1
      %p70 = scmp.eq.s32.totalorder %s18, 7
      %p71 = scmp.ne.s32.totalorder %s66, %s68
      %p72 = scmp.eq.s32.totalorder %s18, 0
      %p73 = por %p71, %p72
      %p74 = scmp.ne.s32.totalorder %s66, %s68
      %p75 = scmp.eq.s32.totalorder %s23, 7
      %p76 = por %p74, %p75
      %p77 = scmp.ne.s32.totalorder %s68, %s69
      %p78 = scmp.eq.s32.totalorder %s23, 0
      %p79 = por %p77, %p78
      %p80 = scmp.ne.s32.totalorder %s68, %s69
      %p81 = scmp.eq.s32.totalorder %s24, 7
      %p82 = por %p80, %p81
      %p84 = scmp.ne.s32.totalorder %s69, %s83
      %p85 = scmp.eq.s32.totalorder %s24, 0
      %p86 = por %p84, %p85
      %s87 = ssub.s32 %s25, %s37
      %s88 = ssub.s32 %s26, %s33
      %s89 = sor.u32 %s87, %s88
      %p90 = scmp.eq.s32.totalorder %s89, 0
      %s92 = sadd.s32 %s91, 1
      %s93 = scalar_select %p90, %s91, %s92
      %p96 = pneg %p90
      %p97 = scmp.eq.s32.totalorder %s18, 7
      %p98 = por %p96, %p97
      %p99 = scmp.ne.s32.totalorder %s91, %s94
      %p100 = scmp.eq.s32.totalorder %s18, 0
      %p101 = por %p99, %p100
      %p102 = scmp.ne.s32.totalorder %s91, %s94
      %p103 = scmp.eq.s32.totalorder %s23, 7
      %p104 = por %p102, %p103
      %p105 = scmp.ne.s32.totalorder %s94, %s95
      %p106 = scmp.eq.s32.totalorder %s23, 0
      %p107 = por %p105, %p106
      %p108 = scmp.ne.s32.totalorder %s94, %s95
      %p109 = scmp.eq.s32.totalorder %s24, 7
      %p110 = por %p108, %p109
      %p112 = scmp.ne.s32.totalorder %s95, %s111
      %p113 = scmp.eq.s32.totalorder %s24, 0
      %p114 = por %p112, %p113
      %s115 = ssub.s32 %s25, %s37
      %s116 = ssub.s32 %s26, %s33
      %s117 = sor.u32 %s115, %s116
      %p118 = scmp.eq.s32.totalorder %s117, 0
      %s120 = sadd.s32 %s119, 1
      %s121 = scalar_select %p118, %s119, %s120
      %p124 = pneg %p118
      %p125 = scmp.eq.s32.totalorder %s18, 7
      %p126 = por %p124, %p125
      %p127 = scmp.ne.s32.totalorder %s119, %s122
      %p128 = scmp.eq.s32.totalorder %s18, 0
      %p129 = por %p127, %p128
      %p130 = scmp.ne.s32.totalorder %s119, %s122
      %p131 = scmp.eq.s32.totalorder %s23, 7
      %p132 = por %p130, %p131
      %p133 = scmp.ne.s32.totalorder %s122, %s123
      %p134 = scmp.eq.s32.totalorder %s23, 0
      %p135 = por %p133, %p134
      %p136 = scmp.ne.s32.totalorder %s122, %s123
      %p137 = scmp.eq.s32.totalorder %s24, 7
      %p138 = por %p136, %p137
      %p140 = scmp.ne.s32.totalorder %s123, %s139
      %p141 = scmp.eq.s32.totalorder %s24, 0
      %p142 = por %p140, %p141
      %s143 = ssub.s32 %s25, %s37
      %s144 = ssub.s32 %s26, %s33
      %s145 = sor.u32 %s143, %s144
      %p146 = scmp.eq.s32.totalorder %s145, 0
      %s148 = sadd.s32 %s147, 1
      %s149 = scalar_select %p146, %s147, %s148
      %p152 = pneg %p146
      %p153 = scmp.eq.s32.totalorder %s18, 7
      %p154 = por %p152, %p153
      %p155 = scmp.ne.s32.totalorder %s147, %s150
      %p156 = scmp.eq.s32.totalorder %s18, 0
      %p157 = por %p155, %p156
      %p158 = scmp.ne.s32.totalorder %s147, %s150
      %p159 = scmp.eq.s32.totalorder %s23, 7
      %p160 = por %p158, %p159
      %p161 = scmp.ne.s32.totalorder %s150, %s151
      %p162 = scmp.eq.s32.totalorder %s23, 0
      %p163 = por %p161, %p162
      %p164 = scmp.ne.s32.totalorder %s150, %s151
      %p165 = scmp.eq.s32.totalorder %s24, 7
      %p166 = por %p164, %p165
      %p168 = scmp.ne.s32.totalorder %s151, %s167
      %p169 = scmp.eq.s32.totalorder %s24, 0
      %p170 = por %p168, %p169
      %p171 = scmp.le.s32.totalorder 1, %s18
      %p172 = scmp.lt.s32.totalorder %s18, 9
      %p173 = pnand %p171, %p172
      %p174 = pneg %p173
      // Predicated region
      $region9: #{tpu_custom_call.1} parent=5 // pred_check
        _
      $region10: #{tpu_custom_call.1} parent=5 // pred_check_branch
        %176 = sbr.rel (%p173) target = $region12
      $region11: #{tpu_custom_call.1} parent=5 // pred_region
        %s177 = ssub.s32 %s18, 1
        // Predicated region
        $region13: #{tpu_custom_call.1} parent=11 // pred_check
          %p178 = pneg %p79
        $region14: #{tpu_custom_call.1} parent=11 // pred_check_branch
          %180 = sbr.rel (%p178) target = $region16
        $region15: #{tpu_custom_call.1} parent=11 // pred_region
          %182 = vsyncadd [#allocation6], 0
          %s184 = sshll.u32 %s1, 4
          %s185 = int_to_ptr.hbm [resolvable:$true] %s184
          %s186 = sshll.u32 [#allocation5], 4
          %s187 = int_to_ptr.vmem [resolvable:$true] %s186
          %189 = dma.hbm_to_vmem [thread:$0]  %s185, 64, %s187, [#allocation6]
        $region16: #{tpu_custom_call.1} parent=11 // pred_fallthru
          _
      $region12: #{tpu_custom_call.1} parent=5 // pred_fallthru
        _
      %p190 = scmp.lt.s32.totalorder %s18, 8
      // Predicated region
      $region17: #{tpu_custom_call.1} parent=5 // pred_check
        %p191 = pneg %p190
      $region18: #{tpu_custom_call.1} parent=5 // pred_check_branch
        %193 = sbr.rel (%p191) target = $region20
      $region19: #{tpu_custom_call.1} parent=5 // pred_region
        // Predicated region
        $region21: #{tpu_custom_call.1} parent=19 // pred_check
          %p194 = pneg %p52
        $region22: #{tpu_custom_call.1} parent=19 // pred_check_branch
          %196 = sbr.rel (%p194) target = $region24
        $region23: #{tpu_custom_call.1} parent=19 // pred_region
          %s197 = sand.u32 %s42, 1
          %s198 = scalar_lea.sflag [#allocation3], %s197
          %s199 = sand.u32 %s42, 1
          %s200 = smul.addr %s199, 16
          %s201 = scalar_lea.vmem [#allocation2], %s200
          %203 = vsyncadd %s198, 0
          %s204 = smul.addr %s25, 16
          %s205 = sadd.s32 %s26, %s204
          %s206 = smul.addr %s205, 4
          %s207 = scalar_lea.hbm %s0, %s206
          %s208 = sshll.u32 %s207, 4
          %s209 = int_to_ptr.hbm [resolvable:$true] %s208
          %s210 = sshll.u32 %s201, 4
          %s211 = int_to_ptr.vmem [resolvable:$true] %s210
          %216 = dma.hbm_to_vmem [thread:$0]  %s209, 256, %s211, %s198, 256, 64, 4
        $region24: #{tpu_custom_call.1} parent=19 // pred_fallthru
          _
      $region20: #{tpu_custom_call.1} parent=5 // pred_fallthru
        _
      %p217 = scmp.le.s32.totalorder 1, %s18
      %p218 = scmp.lt.s32.totalorder %s18, 9
      %p219 = pnand %p217, %p218
      %p220 = pneg %p219
      // Predicated region
      $region25: #{tpu_custom_call.1} parent=5 // pred_check
        _
      $region26: #{tpu_custom_call.1} parent=5 // pred_check_branch
        %222 = sbr.rel (%p219) target = $region28
      $region27: #{tpu_custom_call.1} parent=5 // pred_region
        %s223 = ssub.s32 %s18, 1
        %s224 = sand.u32 %s45, 1
        %s225 = scalar_lea.sflag [#allocation3], %s224
        %s226 = sand.u32 %s45, 1
        %s227 = smul.addr %s226, 16
        %s228 = scalar_lea.vmem [#allocation2], %s227
        // Predicated region
        $region29: #{tpu_custom_call.1} parent=27 // pred_check
          %p229 = pneg %p58
        $region30: #{tpu_custom_call.1} parent=27 // pred_check_branch
          %231 = sbr.rel (%p229) target = $region32
        $region31: #{tpu_custom_call.1} parent=27 // pred_region
          %233 = dma.done %s225, 256
        $region32: #{tpu_custom_call.1} parent=27 // pred_fallthru
          _
        // Predicated region
        $region33: #{tpu_custom_call.1} parent=27 // pred_check
          %p234 = pneg %p79
        $region34: #{tpu_custom_call.1} parent=27 // pred_check_branch
          %236 = sbr.rel (%p234) target = $region36
        $region35: #{tpu_custom_call.1} parent=27 // pred_region
          %238 = dma.done [#allocation6], 64
        $region36: #{tpu_custom_call.1} parent=27 // pred_fallthru
          _
        %s239 = sand.u32 %s45, 1
        %s240 = scalar_lea.sflag [#allocation3], %s239
        %s241 = sand.u32 %s45, 1
        %s242 = smul.addr %s241, 16
        %s243 = scalar_lea.vmem [#allocation2], %s242
        %p244 = pneg %p58
        %p245 = pneg %p55
        %p246 = pneg %p79
        %p247 = pneg %p76
        %p248 = pneg %p107
        %p249 = pneg %p104
        %s250 = sand.u32 %s94, 1
        %s251 = scalar_lea.sflag [#allocation4], %s250
        %s252 = sand.u32 %s94, 1
        %s253 = smul.addr %s252, 8
        %s254 = scalar_lea.vmem [#allocation7], %s253
        %p255 = pneg %p135
        %p256 = pneg %p132
        %p257 = scmp.lt.s32.totalorder %s27, 1
        %s258 = scalar_select %p257, %s27, 1
        %p259 = scmp.lt.s32.totalorder %s28, 3
        %s260 = scalar_select %p259, %s28, 3
        %s261 = smul.addr %s258, 4
        %s262 = sadd.s32 %s260, %s261
        %s263 = smul.addr %s262, 8
        %s264 = scalar_lea.vmem %s3, %s263
        %p265 = pneg %p163
        %p266 = pneg %p160
        %p267 = scmp.lt.s32.totalorder %s27, 1
        %s268 = scalar_select %p267, %s27, 1
        %p269 = scmp.lt.s32.totalorder %s28, 3
        %s270 = scalar_select %p269, %s28, 3
        %s271 = smul.addr %s268, 4
        %s272 = sadd.s32 %s270, %s271
        %s273 = smul.addr %s272, 8
        %s274 = scalar_lea.vmem %s4, %s273
        %p275 = scmp.lt.s32.totalorder %s27, 1
        %s276 = scalar_select %p275, %s27, 1
        %p277 = scmp.lt.s32.totalorder %s28, 3
        %s278 = scalar_select %p277, %s28, 3
        %s279 = smul.addr %s276, 4
        %s280 = sadd.s32 %s278, %s279
        %s281 = smul.addr %s280, 8
        %s282 = scalar_lea.vmem %s3, %s281
        %p283 = scmp.lt.s32.totalorder %s27, 1
        %s284 = scalar_select %p283, %s27, 1
        %p285 = scmp.lt.s32.totalorder %s28, 3
        %s286 = scalar_select %p285, %s28, 3
        %s287 = smul.addr %s284, 4
        %s288 = sadd.s32 %s286, %s287
        %s289 = smul.addr %s288, 8
        %s290 = scalar_lea.vmem %s4, %s289
        %v292 = vld [vmem:[#allocation5] sm:$0xf]
        %v293 = vld [vmem:[%s228] sm:$0xf]
        %v294 = vld [vmem:[%s228 + $0x4] sm:$0xf]
        %v295 = vld [vmem:[%s228 + $0x8] sm:$0xf]
        %v296 = vld [vmem:[%s228 + $0xc] sm:$0xf]
        %v301 = vunpack.c.l.b16 %v293
        %v302 = vunpack.c.l.b16 %v294
        %v303 = vunpack.c.l.b16 %v295
        %v304 = vunpack.c.l.b16 %v296
        %v305 = vpack.c.b16 %v302, %v301
        %v306 = vpack.c.b16 %v304, %v303
        %vm309 = vcmask 261120
        %v311 = vsel %vm309, %v292, 0
        %313 = vmatpush.bf16.msra.mxu0 0
        %314 = vmatpush.bf16.msra.mxu0 0
        %315 = vmatpush.bf16.msra.mxu0 0
        %316 = vmatpush.bf16.msra.mxu0 0
        %317 = vmatpush.bf16.msra.mxu0 0
        %318 = vmatpush.bf16.msra.mxu0 0
        %319 = vmatpush.bf16.msra.mxu0 %v306
        %320 = vmatpush.bf16.msra.mxu0 %v305
        %321 = vmatmul.bf16.gmra.mxu0 %v311
        %v322 = vpop.f32.mrf.mxu0
        %v323 = vadd.f32 0.0, %v322
        %v324 = vpop.f32.mrf.mxu0
        %325 = vdwg.mxu0
        %326 = vst [vmem:[%s254] sm:$0xff] %v323
        %327 = vadd.xlane.f32.xlu0 %v323
        %v328 = vpop.xlane.xlu0 %327
        %vm329 = vcmask 7168
        %330 = vst.msk [vmem:[%s282] sm:$0xff] %vm329, %v328
        %v331 = vmul.f32 %v323, %v323
        %332 = vadd.xlane.f32.xlu0 %v331
        %v333 = vpop.xlane.xlu0 %332
        %334 = vst.msk [vmem:[%s290] sm:$0xff] %vm329, %v333
        %s335 = sand.u32 %s94, 1
        %s336 = scalar_lea.sflag [#allocation4], %s335
        %s337 = sand.u32 %s94, 1
        %s338 = smul.addr %s337, 8
        %s339 = scalar_lea.vmem [#allocation7], %s338
        %p340 = scmp.lt.s32.totalorder %s27, 1
        %s341 = scalar_select %p340, %s27, 1
        %p342 = scmp.lt.s32.totalorder %s28, 3
        %s343 = scalar_select %p342, %s28, 3
        %s344 = smul.addr %s341, 4
        %s345 = sadd.s32 %s343, %s344
        %s346 = smul.addr %s345, 8
        %s347 = scalar_lea.vmem %s3, %s346
        %p348 = scmp.lt.s32.totalorder %s27, 1
        %s349 = scalar_select %p348, %s27, 1
        %p350 = scmp.lt.s32.totalorder %s28, 3
        %s351 = scalar_select %p350, %s28, 3
        %s352 = smul.addr %s349, 4
        %s353 = sadd.s32 %s351, %s352
        %s354 = smul.addr %s353, 8
        %s355 = scalar_lea.vmem %s4, %s354
        // Predicated region
        $region37: #{tpu_custom_call.1} parent=27 // pred_check
          %p356 = pneg %p104
        $region38: #{tpu_custom_call.1} parent=27 // pred_check_branch
          %358 = sbr.rel (%p356) target = $region40
        $region39: #{tpu_custom_call.1} parent=27 // pred_region
          %360 = vsyncadd %s336, 0
          %s361 = smul.addr %s27, 4
          %s362 = sadd.s32 %s28, %s361
          %s363 = smul.addr %s362, 8
          %s364 = scalar_lea.hbm %s2, %s363
          %s366 = sshll.u32 %s339, 4
          %s367 = int_to_ptr.vmem [resolvable:$true] %s366
          %s368 = sshll.u32 %s364, 4
          %s369 = int_to_ptr.hbm [resolvable:$true] %s368
          %371 = dma.vmem_to_hbm [thread:$0]  %s367, 128, %s369, %s336
        $region40: #{tpu_custom_call.1} parent=27 // pred_fallthru
          _
        // Predicated region
        $region41: #{tpu_custom_call.1} parent=27 // pred_check
          %p372 = pneg %p132
        $region42: #{tpu_custom_call.1} parent=27 // pred_check_branch
          %374 = sbr.rel (%p372) target = $region44
        $region43: #{tpu_custom_call.1} parent=27 // pred_region
          _
        $region44: #{tpu_custom_call.1} parent=27 // pred_fallthru
          _
        // Predicated region
        $region45: #{tpu_custom_call.1} parent=27 // pred_check
          %p375 = pneg %p160
        $region46: #{tpu_custom_call.1} parent=27 // pred_check_branch
          %377 = sbr.rel (%p375) target = $region48
        $region47: #{tpu_custom_call.1} parent=27 // pred_region
          _
        $region48: #{tpu_custom_call.1} parent=27 // pred_fallthru
          _
      $region28: #{tpu_custom_call.1} parent=5 // pred_fallthru
        _
      %p378 = scmp.le.s32.totalorder 2, %s18
      // Predicated region
      $region49: #{tpu_custom_call.1} parent=5 // pred_check
        %p379 = pneg %p378
      $region50: #{tpu_custom_call.1} parent=5 // pred_check_branch
        %381 = sbr.rel (%p379) target = $region52
      $region51: #{tpu_custom_call.1} parent=5 // pred_region
        %s382 = ssub.s32 %s18, 2
        // Predicated region
        $region53: #{tpu_custom_call.1} parent=51 // pred_check
          %p383 = pneg %p110
        $region54: #{tpu_custom_call.1} parent=51 // pred_check_branch
          %385 = sbr.rel (%p383) target = $region56
        $region55: #{tpu_custom_call.1} parent=51 // pred_region
          %s386 = sand.u32 %s95, 1
          %s387 = scalar_lea.sflag [#allocation4], %s386
          %s388 = sand.u32 %s95, 1
          %s389 = smul.addr %s388, 8
          %s390 = scalar_lea.vmem [#allocation7], %s389
          %392 = dma.done %s387, 128
        $region56: #{tpu_custom_call.1} parent=51 // pred_fallthru
          _
        // Predicated region
        $region57: #{tpu_custom_call.1} parent=51 // pred_check
          %p393 = pneg %p138
        $region58: #{tpu_custom_call.1} parent=51 // pred_check_branch
          %395 = sbr.rel (%p393) target = $region60
        $region59: #{tpu_custom_call.1} parent=51 // pred_region
          %p396 = scmp.lt.s32.totalorder %s29, 1
          %s397 = scalar_select %p396, %s29, 1
          %p398 = scmp.lt.s32.totalorder %s30, 3
          %s399 = scalar_select %p398, %s30, 3
          %s400 = smul.addr %s397, 4
          %s401 = sadd.s32 %s399, %s400
          %s402 = smul.addr %s401, 8
          %s403 = scalar_lea.vmem %s3, %s402
        $region60: #{tpu_custom_call.1} parent=51 // pred_fallthru
          _
        // Predicated region
        $region61: #{tpu_custom_call.1} parent=51 // pred_check
          %p404 = pneg %p166
        $region62: #{tpu_custom_call.1} parent=51 // pred_check_branch
          %406 = sbr.rel (%p404) target = $region64
        $region63: #{tpu_custom_call.1} parent=51 // pred_region
          %p407 = scmp.lt.s32.totalorder %s29, 1
          %s408 = scalar_select %p407, %s29, 1
          %p409 = scmp.lt.s32.totalorder %s30, 3
          %s410 = scalar_select %p409, %s30, 3
          %s411 = smul.addr %s408, 4
          %s412 = sadd.s32 %s410, %s411
          %s413 = smul.addr %s412, 8
          %s414 = scalar_lea.vmem %s4, %s413
        $region64: #{tpu_custom_call.1} parent=51 // pred_fallthru
          _
      $region52: #{tpu_custom_call.1} parent=5 // pred_fallthru
        _
    $region6: #{tpu_custom_call.1} parent=1 // loop_footer
      %s22 = sadd.s32 1, %s18
    $region7: #{tpu_custom_call.1} parent=1 // loop_footer_branch
      %17 = sbr.rel target = $region3
    $region8: #{tpu_custom_call.1} parent=1 // loop_exit
      _
    %415 = vsyncpa [#allocation3], 1
    %s416 = scalar_lea.sflag [#allocation3], 1
    %417 = vsyncpa %s416, 1
    %418 = vsyncpa [#allocation6], 1
    %419 = vsyncpa [#allocation4], 1
    %s420 = scalar_lea.sflag [#allocation4], 1
    %421 = vsyncpa %s420, 1

</llo_original>
